<compile_context>
chip_gen: v5e
topology: v5e:2x2
jax: 0.10.0
libtpu: 0.0.40
codegen_flags: <defaults>
</compile_context>

<pallas_src>
import jax
import jax.numpy as jnp
from jax.experimental import pallas as pl
from jax.experimental.pallas import tpu as pltpu


def _flash_self_attention_kernel(q_ref, kv_ref, o_ref, m_sc, l_sc, acc_sc):
    ki = pl.program_id(2)

    @pl.when(ki == 0)
    def _():
        m_sc[...] = jnp.full_like(m_sc, -jnp.inf)
        l_sc[...] = jnp.zeros_like(l_sc)
        acc_sc[...] = jnp.zeros_like(acc_sc)

    q = q_ref[...]      # (bb, tq, D) in the input dtype (no f32 upcast)
    kv = kv_ref[...]    # (bb, tk, D) — keys and values are the same tile

    # Raw scores: contract the D axis directly (no explicit x.T copy).
    s = jnp.einsum("bqd,bkd->bqk", q, kv,
                   preferred_element_type=jnp.float32)          # (bb, tq, tk)

    m_prev = m_sc[...]
    m_new = jnp.maximum(m_prev, jnp.max(s, axis=-1, keepdims=True))
    alpha = jnp.exp(m_prev - m_new)                              # rescale factor
    p = jnp.exp(s - m_new)                                       # unnormalized probs

    l_sc[...] = alpha * l_sc[...] + jnp.sum(p, axis=-1, keepdims=True)
    acc_sc[...] = alpha * acc_sc[...] + jnp.einsum(
        "bqk,bkd->bqd", p.astype(kv.dtype), kv,
        preferred_element_type=jnp.float32)
    m_sc[...] = m_new

    @pl.when(ki == pl.num_programs(2) - 1)
    def _():
        # Normalize once at the very end: S*D multiplies instead of S*S.
        inv_l = pl.reciprocal(l_sc[...], approx=True)
        o_ref[...] = (acc_sc[...] * inv_l).astype(o_ref.dtype)


def _pick_seq_tile(S: int, target: int) -> int:
    """Largest tile <= target that divides S and is a multiple of 8, else S."""
    if S <= target:
        return S
    for t in range(target, 7, -1):
        if S % t == 0 and t % 8 == 0:
            return t
    return S


def _pick_batch_tile(B: int, per_batch_tile_bytes: int, budget: int = 1 << 20) -> int:
    """Fold several batch elements per block when the per-batch tile is tiny."""
    for cand in range(B, 0, -1):
        if B % cand == 0 and cand * per_batch_tile_bytes <= budget:
            return cand
    return 1


def self_attention(x: jax.Array, *, block_q: int = 256, block_kv: int = 512) -> jax.Array:
    """Parameter-free self-attention. x: (B, S, D) -> (B, S, D)."""
    B, S, D = x.shape
    itemsize = jnp.dtype(x.dtype).itemsize

    tq = _pick_seq_tile(S, block_q)
    tk = _pick_seq_tile(S, block_kv)
    bb = _pick_batch_tile(B, max(tq, tk) * D * itemsize)

    grid = (B // bb, S // tq, S // tk)

    # VMEM budget for the chosen tiles (double-buffered inputs/outputs + f32
    # scratch) with ~50% headroom; sized well under v7x's 64 MiB physical VMEM.
    vmem_bytes = int(1.5 * (
        2 * bb * tq * D * itemsize        # q blocks (double-buffered)
        + 2 * bb * tk * D * itemsize      # kv blocks
        + 2 * bb * tq * D * itemsize      # output blocks
        + bb * tq * (D + 2) * 4           # f32 scratch: acc + m + l
    ))
    vmem_bytes = max(vmem_bytes, 4 << 20)

    cost = pl.CostEstimate(
        flops=4 * B * S * S * D,
        transcendentals=B * S * S,
        bytes_accessed=3 * B * S * D * itemsize,
    )

    return pl.pallas_call(
        _flash_self_attention_kernel,
        out_shape=jax.ShapeDtypeStruct((B, S, D), x.dtype),
        grid_spec=pltpu.PrefetchScalarGridSpec(
            num_scalar_prefetch=0,
            grid=grid,
            in_specs=[
                pl.BlockSpec((bb, tq, D), lambda bi, qi, ki: (bi, qi, 0)),  # queries
                pl.BlockSpec((bb, tk, D), lambda bi, qi, ki: (bi, ki, 0)),  # keys/values
            ],
            out_specs=pl.BlockSpec((bb, tq, D), lambda bi, qi, ki: (bi, qi, 0)),
            scratch_shapes=[
                pltpu.VMEM((bb, tq, 1), jnp.float32),   # running max
                pltpu.VMEM((bb, tq, 1), jnp.float32),   # running sum
                pltpu.VMEM((bb, tq, D), jnp.float32),   # output accumulator
            ],
        ),
        compiler_params=pltpu.CompilerParams(
            dimension_semantics=("parallel", "parallel", "arbitrary"),
            vmem_limit_bytes=vmem_bytes,
        ),
        cost_estimate=cost,
    )(x, x)


def _reference(x: jax.Array) -> jax.Array:
    raw = jnp.einsum("bsd,btd->bst", x, x)
    w = jax.nn.softmax(raw.astype(jnp.float32), axis=2)
    return jnp.einsum("bst,btd->bsd", w, x.astype(jnp.float32)).astype(x.dtype)


if __name__ == "__main__":
    key = jax.random.PRNGKey(0)

    # Small shape consistent with the module (batch=2, seq=8, hidden=32).
    B, S, D = 2, 8, 32
    x = jax.random.normal(key, (B, S, D), dtype=jnp.float32)
    out = self_attention(x)
    jax.block_until_ready(out)
    ref = _reference(x)
    assert out.shape == (B, S, D)
    assert jnp.allclose(out, ref, atol=1e-2, rtol=1e-2), "mismatch vs reference (small)"

    # Second shape that actually exercises the tiled online-softmax path
    # (grid has multiple query and kv tiles).
    B2, S2, D2 = 2, 64, 32
    x2 = jax.random.normal(jax.random.PRNGKey(1), (B2, S2, D2), dtype=jnp.float32)
    out2 = self_attention(x2, block_q=16, block_kv=16)
    jax.block_until_ready(out2)
    ref2 = _reference(x2)
    assert out2.shape == (B2, S2, D2)
    assert jnp.allclose(out2, ref2, atol=1e-2, rtol=1e-2), "mismatch vs reference (tiled)"

    print("KERNEL_OK")
</pallas_src>

<mosaic_0001>
module attributes {stable_mosaic.version = 11 : i64} {
  func.func @_flash_self_attention_kernel(%arg0: i32, %arg1: i32, %arg2: i32, %arg3: memref<2x8x32xf32, #tpu.memory_space<vmem>>, %arg4: memref<2x8x32xf32, #tpu.memory_space<vmem>>, %arg5: memref<2x8x32xf32, #tpu.memory_space<vmem>>, %arg6: memref<2x8x1xf32, #tpu.memory_space<vmem>>, %arg7: memref<2x8x1xf32, #tpu.memory_space<vmem>>, %arg8: memref<2x8x32xf32, #tpu.memory_space<vmem>>) attributes {dimension_semantics = [#tpu.dimension_semantics<parallel>, #tpu.dimension_semantics<parallel>, #tpu.dimension_semantics<arbitrary>], iteration_bounds = array<i64: 1, 1, 1>, scalar_prefetch = 0 : i64, scratch_operands = 3 : i64, tpu.core_type = #tpu.core_type<tc>, window_params = [{transform_indices = @transform_0, window_bounds = array<i64: 2, 8, 32>}, {transform_indices = @transform_1, window_bounds = array<i64: 2, 8, 32>}, {transform_indices = @transform_2, window_bounds = array<i64: 2, 8, 32>}]} {
    %c0_i32 = arith.constant 0 : i32
    %0 = arith.cmpi eq, %arg2, %c0_i32 : i32
    %1 = arith.extui %0 : i1 to i32
    %c0_i32_0 = arith.constant 0 : i32
    %2 = arith.cmpi ne, %1, %c0_i32_0 : i32
    scf.if %2 {
      %cst_29 = arith.constant 0xFF800000 : f32
      %31 = vector.broadcast %cst_29 : f32 to vector<2x8x1xf32>
      %c0_30 = arith.constant 0 : index
      %c0_31 = arith.constant 0 : index
      %c0_32 = arith.constant 0 : index
      %32 = vector.load %arg6[%c0_30, %c0_31, %c0_32] : memref<2x8x1xf32, #tpu.memory_space<vmem>>, vector<2x8x1xf32>
      tpu.vector_store %arg6[%c0_30, %c0_31, %c0_32], %31 {strides = array<i32>} : memref<2x8x1xf32, #tpu.memory_space<vmem>>, vector<2x8x1xf32>,
      %cst_33 = arith.constant 0.000000e+00 : f32
      %33 = vector.broadcast %cst_33 : f32 to vector<2x8x1xf32>
      %c0_34 = arith.constant 0 : index
      %c0_35 = arith.constant 0 : index
      %c0_36 = arith.constant 0 : index
      %34 = vector.load %arg7[%c0_34, %c0_35, %c0_36] : memref<2x8x1xf32, #tpu.memory_space<vmem>>, vector<2x8x1xf32>
      tpu.vector_store %arg7[%c0_34, %c0_35, %c0_36], %33 {strides = array<i32>} : memref<2x8x1xf32, #tpu.memory_space<vmem>>, vector<2x8x1xf32>,
      %cst_37 = arith.constant 0.000000e+00 : f32
      %35 = vector.broadcast %cst_37 : f32 to vector<2x8x32xf32>
      %c0_38 = arith.constant 0 : index
      %c0_39 = arith.constant 0 : index
      %c0_40 = arith.constant 0 : index
      %36 = vector.load %arg8[%c0_38, %c0_39, %c0_40] : memref<2x8x32xf32, #tpu.memory_space<vmem>>, vector<2x8x32xf32>
      tpu.vector_store %arg8[%c0_38, %c0_39, %c0_40], %35 {strides = array<i32>} : memref<2x8x32xf32, #tpu.memory_space<vmem>>, vector<2x8x32xf32>,
    } else {
    }
    %c0 = arith.constant 0 : index
    %c0_1 = arith.constant 0 : index
    %c0_2 = arith.constant 0 : index
    %3 = vector.load %arg3[%c0, %c0_1, %c0_2] : memref<2x8x32xf32, #tpu.memory_space<vmem>>, vector<2x8x32xf32>
    %c0_3 = arith.constant 0 : index
    %c0_4 = arith.constant 0 : index
    %c0_5 = arith.constant 0 : index
    %4 = vector.load %arg4[%c0_3, %c0_4, %c0_5] : memref<2x8x32xf32, #tpu.memory_space<vmem>>, vector<2x8x32xf32>
    "tpu.trace_start"() <{level = 10 : i32, message = "bqd,bkd->bqk"}> : () -> ()
    %cst = arith.constant dense<0.000000e+00> : vector<2x8x8xf32>
    %5 = tpu.matmul %3, %4, %cst {dimension_numbers = #tpu.dot_dimension_numbers<[2], [2], [1], [1], [0, 0, 0, 1, 1, 1], [0], [0]>} : vector<2x8x32xf32>, vector<2x8x32xf32>, vector<2x8x8xf32> -> vector<2x8x8xf32>
    "tpu.trace_stop"() : () -> ()
    %c0_6 = arith.constant 0 : index
    %c0_7 = arith.constant 0 : index
    %c0_8 = arith.constant 0 : index
    %6 = vector.load %arg6[%c0_6, %c0_7, %c0_8] : memref<2x8x1xf32, #tpu.memory_space<vmem>>, vector<2x8x1xf32>
    %cst_9 = arith.constant dense<0xFF800000> : vector<2x8xf32>
    %7 = vector.multi_reduction <maximumf>, %5, %cst_9 [2] : vector<2x8x8xf32> to vector<2x8xf32>
    %8 = vector.shape_cast %7 : vector<2x8xf32> to vector<2x8x1xf32>
    %9 = arith.maximumf %6, %8 : vector<2x8x1xf32>
    %10 = arith.subf %6, %9 : vector<2x8x1xf32>
    %11 = math.exp %10 : vector<2x8x1xf32>
    %12 = vector.broadcast %9 : vector<2x8x1xf32> to vector<2x8x8xf32>
    %13 = arith.subf %5, %12 : vector<2x8x8xf32>
    %14 = math.exp %13 : vector<2x8x8xf32>
    %c0_10 = arith.constant 0 : index
    %c0_11 = arith.constant 0 : index
    %c0_12 = arith.constant 0 : index
    %15 = vector.load %arg7[%c0_10, %c0_11, %c0_12] : memref<2x8x1xf32, #tpu.memory_space<vmem>>, vector<2x8x1xf32>
    %16 = arith.mulf %11, %15 : vector<2x8x1xf32>
    %cst_13 = arith.constant dense<0.000000e+00> : vector<2x8xf32>
    %17 = vector.multi_reduction <add>, %14, %cst_13 [2] : vector<2x8x8xf32> to vector<2x8xf32>
    %18 = vector.shape_cast %17 : vector<2x8xf32> to vector<2x8x1xf32>
    %19 = arith.addf %16, %18 : vector<2x8x1xf32>
    %c0_14 = arith.constant 0 : index
    %c0_15 = arith.constant 0 : index
    %c0_16 = arith.constant 0 : index
    %20 = vector.load %arg7[%c0_14, %c0_15, %c0_16] : memref<2x8x1xf32, #tpu.memory_space<vmem>>, vector<2x8x1xf32>
    tpu.vector_store %arg7[%c0_14, %c0_15, %c0_16], %19 {strides = array<i32>} : memref<2x8x1xf32, #tpu.memory_space<vmem>>, vector<2x8x1xf32>,
    %c0_17 = arith.constant 0 : index
    %c0_18 = arith.constant 0 : index
    %c0_19 = arith.constant 0 : index
    %21 = vector.load %arg8[%c0_17, %c0_18, %c0_19] : memref<2x8x32xf32, #tpu.memory_space<vmem>>, vector<2x8x32xf32>
    %22 = vector.broadcast %11 : vector<2x8x1xf32> to vector<2x8x32xf32>
    %23 = arith.mulf %22, %21 : vector<2x8x32xf32>
    "tpu.trace_start"() <{level = 10 : i32, message = "bqk,bkd->bqd"}> : () -> ()
    %cst_20 = arith.constant dense<0.000000e+00> : vector<2x8x32xf32>
    %24 = tpu.matmul %14, %4, %cst_20 {dimension_numbers = #tpu.dot_dimension_numbers<[2], [1], [1], [2], [0, 0, 0, 1, 1, 2], [0], [0]>} : vector<2x8x8xf32>, vector<2x8x32xf32>, vector<2x8x32xf32> -> vector<2x8x32xf32>
    "tpu.trace_stop"() : () -> ()
    %25 = arith.addf %23, %24 : vector<2x8x32xf32>
    %c0_21 = arith.constant 0 : index
    %c0_22 = arith.constant 0 : index
    %c0_23 = arith.constant 0 : index
    %26 = vector.load %arg8[%c0_21, %c0_22, %c0_23] : memref<2x8x32xf32, #tpu.memory_space<vmem>>, vector<2x8x32xf32>
    tpu.vector_store %arg8[%c0_21, %c0_22, %c0_23], %25 {strides = array<i32>} : memref<2x8x32xf32, #tpu.memory_space<vmem>>, vector<2x8x32xf32>,
    %c0_24 = arith.constant 0 : index
    %c0_25 = arith.constant 0 : index
    %c0_26 = arith.constant 0 : index
    %27 = vector.load %arg6[%c0_24, %c0_25, %c0_26] : memref<2x8x1xf32, #tpu.memory_space<vmem>>, vector<2x8x1xf32>
    tpu.vector_store %arg6[%c0_24, %c0_25, %c0_26], %9 {strides = array<i32>} : memref<2x8x1xf32, #tpu.memory_space<vmem>>, vector<2x8x1xf32>,
    %c0_i32_27 = arith.constant 0 : i32
    %28 = arith.cmpi eq, %arg2, %c0_i32_27 : i32
    %29 = arith.extui %28 : i1 to i32
    %c0_i32_28 = arith.constant 0 : i32
    %30 = arith.cmpi ne, %29, %c0_i32_28 : i32
    scf.if %30 {
      %c0_29 = arith.constant 0 : index
      %c0_30 = arith.constant 0 : index
      %c0_31 = arith.constant 0 : index
      %31 = vector.load %arg7[%c0_29, %c0_30, %c0_31] : memref<2x8x1xf32, #tpu.memory_space<vmem>>, vector<2x8x1xf32>
      %32 = tpu.reciprocal %31 {approx = true} : vector<2x8x1xf32> -> vector<2x8x1xf32>
      %c0_32 = arith.constant 0 : index
      %c0_33 = arith.constant 0 : index
      %c0_34 = arith.constant 0 : index
      %33 = vector.load %arg8[%c0_32, %c0_33, %c0_34] : memref<2x8x32xf32, #tpu.memory_space<vmem>>, vector<2x8x32xf32>
      %34 = vector.broadcast %32 : vector<2x8x1xf32> to vector<2x8x32xf32>
      %35 = arith.mulf %33, %34 : vector<2x8x32xf32>
      %c0_35 = arith.constant 0 : index
      %c0_36 = arith.constant 0 : index
      %c0_37 = arith.constant 0 : index
      %36 = vector.load %arg5[%c0_35, %c0_36, %c0_37] : memref<2x8x32xf32, #tpu.memory_space<vmem>>, vector<2x8x32xf32>
      tpu.vector_store %arg5[%c0_35, %c0_36, %c0_37], %35 {strides = array<i32>} : memref<2x8x32xf32, #tpu.memory_space<vmem>>, vector<2x8x32xf32>,
    } else {
    }
    return
  }
  func.func @transform_0(%arg0: i32, %arg1: i32, %arg2: i32) -> (i32, i32, i32) {
    %c0_i32 = arith.constant 0 : i32
    %c0_i32_0 = arith.constant 0 : i32
    return %arg0, %arg1, %c0_i32 : i32, i32, i32
  }
  func.func @transform_1(%arg0: i32, %arg1: i32, %arg2: i32) -> (i32, i32, i32) {
    %c0_i32 = arith.constant 0 : i32
    %c0_i32_0 = arith.constant 0 : i32
    return %arg0, %arg2, %c0_i32 : i32, i32, i32
  }
  func.func @transform_2(%arg0: i32, %arg1: i32, %arg2: i32) -> (i32, i32, i32) {
    %c0_i32 = arith.constant 0 : i32
    %c0_i32_0 = arith.constant 0 : i32
    return %arg0, %arg1, %c0_i32 : i32, i32, i32
  }
}

</mosaic_0001>

<llo_original>
// kernel: tpu_custom_call.1
$region0: #{tpu_custom_call.1}
  #allocation0 [shape = 'u32[]', space=smem, size = 0x4, offset = 0x4, fixed_abs, tag = 'smem constant byte address 0x4 - core index']
  #allocation1 [shape = 'u32[72,128]{1,0:T(1,128)}', space=vmem, size = 0x9000, scoped, tag = 'internal scratch']
  #allocation2 [shape = 'f32[2,8,1]{2,1,0:T(8,128)}', space=vmem, size = 0x2000, scoped, tag = 'scratch operand']
  #allocation3 [shape = 'f32[2,8,1]{2,1,0:T(8,128)}', space=vmem, size = 0x2000, scoped, tag = 'scratch operand']
  #allocation4 [shape = 'f32[2,8,32]{2,1,0:T(8,128)}', space=vmem, size = 0x2000, scoped, tag = 'scratch operand']
  %s0 = inlined_call_operand.hbm [shape: f32[2,8,32], index: 0, kind: input, shape index: {}]
  %s1 = inlined_call_operand.hbm [shape: f32[2,8,32], index: 1, kind: input, shape index: {}]
  %s2 = inlined_call_operand.hbm [shape: f32[2,8,32], index: 2, kind: output, shape index: {}]
  %s3 = sld [smem:[#allocation0]]
  $region34: #{tpu_custom_call.1} parent=0
    _
  %s5 = ssub.s32 1, %s3
  %s6 = scalar_select 0, %s5, %s3
  $region1: #{tpu_custom_call.1} parent=0
    #allocation5 [shape = 'u8[8192]{0}', space=vmem, size = 0x2000, scoped, tag = 'input window, operand 0, single buffered']
    #allocation6 [shape = 's32[1]{0}', space=sflag, size = 0x4, scoped, tag = 'scoped memory for tpu_custom_call.1']
    #allocation7 [shape = 's32[1]{0}', space=sflag, size = 0x4, scoped, tag = 'scoped memory for tpu_custom_call.1']
    #allocation8 [shape = 'u8[8192]{0}', space=vmem, size = 0x2000, scoped, tag = 'input window, operand 1, single buffered']
    #allocation9 [shape = 's32[1]{0}', space=sflag, size = 0x4, scoped, tag = 'scoped memory for tpu_custom_call.1']
    #allocation10 [shape = 'u8[8192]{0}', space=vmem, size = 0x2000, scoped, tag = 'output window, operand 0, single buffered']
    %7 = vsyncpa [#allocation6], 0
    %8 = vsyncpa [#allocation9], 0
    %9 = vsyncpa [#allocation7], 0
    // Predicated region
    $region2: #{tpu_custom_call.1} parent=1 // pred_check
      _
    $region3: #{tpu_custom_call.1} parent=1 // pred_check_branch
      %11 = sbr.rel (0) target = $region5
    $region4: #{tpu_custom_call.1} parent=1 // pred_region
      %13 = vsyncadd [#allocation6], 0
      %s14 = sshll.u32 %s0, 4
      %s15 = int_to_ptr.hbm [resolvable:$true] %s14
      %s16 = sshll.u32 [#allocation5], 4
      %s17 = int_to_ptr.vmem [resolvable:$true] %s16
      %22 = dma.hbm_to_vmem [thread:$0]  %s15, 256, %s17, [#allocation6], 128, 128, 8
    $region5: #{tpu_custom_call.1} parent=1 // pred_fallthru
      _
    // Predicated region
    $region6: #{tpu_custom_call.1} parent=1 // pred_check
      _
    $region7: #{tpu_custom_call.1} parent=1 // pred_check_branch
      %24 = sbr.rel (0) target = $region9
    $region8: #{tpu_custom_call.1} parent=1 // pred_region
      %26 = vsyncadd [#allocation9], 0
      %s27 = sshll.u32 %s1, 4
      %s28 = int_to_ptr.hbm [resolvable:$true] %s27
      %s29 = sshll.u32 [#allocation8], 4
      %s30 = int_to_ptr.vmem [resolvable:$true] %s29
      %35 = dma.hbm_to_vmem [thread:$0]  %s28, 256, %s30, [#allocation9], 128, 128, 8
    $region9: #{tpu_custom_call.1} parent=1 // pred_fallthru
      _
    // Predicated region
    $region10: #{tpu_custom_call.1} parent=1 // pred_check
      _
    $region11: #{tpu_custom_call.1} parent=1 // pred_check_branch
      %37 = sbr.rel (0) target = $region13
    $region12: #{tpu_custom_call.1} parent=1 // pred_region
      %39 = dma.done [#allocation6], 256
    $region13: #{tpu_custom_call.1} parent=1 // pred_fallthru
      _
    // Predicated region
    $region14: #{tpu_custom_call.1} parent=1 // pred_check
      _
    $region15: #{tpu_custom_call.1} parent=1 // pred_check_branch
      %41 = sbr.rel (0) target = $region17
    $region16: #{tpu_custom_call.1} parent=1 // pred_region
      %43 = dma.done [#allocation9], 256
    $region17: #{tpu_custom_call.1} parent=1 // pred_fallthru
      _
    %p44 = scmp.eq.s32.totalorder 0, 0
    // Predicated region
    $region18: #{tpu_custom_call.1} parent=1 // pred_check
      %p45 = pneg %p44
    $region19: #{tpu_custom_call.1} parent=1 // pred_check_branch
      %47 = sbr.rel (%p45) target = $region21
    $region20: #{tpu_custom_call.1} parent=1 // pred_region
      %vm48 = vcmask 7168
      %49 = vst.msk [vmem:[#allocation2] sm:$0xff] %vm48, -inf
      %50 = vst.msk [vmem:[#allocation2 + $0x8] sm:$0xff] %vm48, -inf
      %51 = vst.msk [vmem:[#allocation3] sm:$0xff] %vm48, 0.0
      %52 = vst.msk [vmem:[#allocation3 + $0x8] sm:$0xff] %vm48, 0.0
      %vm53 = vcmask 261120
      %54 = vst.msk [vmem:[#allocation4] sm:$0xff] %vm53, 0.0
      %55 = vst.msk [vmem:[#allocation4 + $0x8] sm:$0xff] %vm53, 0.0
    $region21: #{tpu_custom_call.1} parent=1 // pred_fallthru
      _
    %v56 = vld [vmem:[#allocation5] sm:$0xff]
    %v57 = vld [vmem:[#allocation5 + $0x8] sm:$0xff]
    %v58 = vld [vmem:[#allocation8] sm:$0xff]
    %v59 = vld [vmem:[#allocation8 + $0x8] sm:$0xff]
    %vm60 = vcmask 261120
    %v62 = vsel %vm60, %v56, 0
    %v65 = vsel %vm60, %v58, 0
    %67 = vmatpush.xpose.msra.mxu0 0.0
    %68 = vmatpush.xpose.msra.mxu0 0.0
    %69 = vmatpush.xpose.msra.mxu0 0.0
    %70 = vmatpush.xpose.msra.mxu0 0.0
    %71 = vmatpush.xpose.msra.mxu0 0.0
    %72 = vmatpush.xpose.msra.mxu0 0.0
    %73 = vmatpush.xpose.msra.mxu0 0.0
    %74 = vmatpush.xpose.msra.mxu0 0.0
    %75 = vmatpush.xpose.msra.mxu0 0.0
    %76 = vmatpush.xpose.msra.mxu0 0.0
    %77 = vmatpush.xpose.msra.mxu0 0.0
    %78 = vmatpush.xpose.msra.mxu0 0.0
    %79 = vmatpush.xpose.msra.mxu0 0.0
    %80 = vmatpush.xpose.msra.mxu0 0.0
    %81 = vmatpush.xpose.msra.mxu0 0.0
    %82 = vmatpush.xpose.msra.mxu0 %v65
    %83 = vmatmul.f32.gmra.mxu0 %v62
    %v84 = vpop.f32.mrf.mxu0
    %v85 = vadd.f32 0.0, %v84
    %86 = vdwg.mxu0
    %v88 = vsel %vm60, %v57, 0
    %v91 = vsel %vm60, %v59, 0
    %93 = vmatpush.xpose.msra.mxu0 0.0
    %94 = vmatpush.xpose.msra.mxu0 0.0
    %95 = vmatpush.xpose.msra.mxu0 0.0
    %96 = vmatpush.xpose.msra.mxu0 0.0
    %97 = vmatpush.xpose.msra.mxu0 0.0
    %98 = vmatpush.xpose.msra.mxu0 0.0
    %99 = vmatpush.xpose.msra.mxu0 0.0
    %100 = vmatpush.xpose.msra.mxu0 0.0
    %101 = vmatpush.xpose.msra.mxu0 0.0
    %102 = vmatpush.xpose.msra.mxu0 0.0
    %103 = vmatpush.xpose.msra.mxu0 0.0
    %104 = vmatpush.xpose.msra.mxu0 0.0
    %105 = vmatpush.xpose.msra.mxu0 0.0
    %106 = vmatpush.xpose.msra.mxu0 0.0
    %107 = vmatpush.xpose.msra.mxu0 0.0
    %108 = vmatpush.xpose.msra.mxu0 %v91
    %109 = vmatmul.f32.gmra.mxu0 %v88
    %v110 = vpop.f32.mrf.mxu0
    %v111 = vadd.f32 0.0, %v110
    %112 = vdwg.mxu0
    %v113 = vld [vmem:[#allocation2] sm:$0xff]
    %v114 = vld [vmem:[#allocation2 + $0x8] sm:$0xff]
    %vm115 = vcmask 64512
    %v116 = vsel %vm115, %v85, -inf
    %117 = vmax.xlane.f32.xlu0 %v116
    %v118 = vpop.xlane.xlu0 %117
    %v119 = vsel %vm115, %v111, -inf
    %120 = vmax.xlane.f32.xlu0 %v119
    %v121 = vpop.xlane.xlu0 %120
    %v122 = vmax.f32 %v113, %v118
    %v123 = vmax.f32 %v114, %v121
    %v124 = vsub.f32 %v113, %v122
    %v125 = vsub.f32 %v114, %v123
    %v126 = vmul.f32 %v124, 1.442695
    %v127 = vpow.pop %v126
    %v128 = vmul.f32 %v125, 1.442695
    %v129 = vpow.pop %v128
    %131 = vset.pattern.permute.xlu0 0
    %132 = vperm.xlu0 %131, %v122
    %v133 = vpop.permute.xlu0 %132
    %136 = vset.pattern.permute.xlu0 0
    %137 = vperm.xlu0 %136, %v123
    %v138 = vpop.permute.xlu0 %137
    %v140 = vsub.f32 %v85, %v133
    %v141 = vsub.f32 %v111, %v138
    %v142 = vmul.f32 %v140, 1.442695
    %v143 = vpow.pop %v142
    %v144 = vmul.f32 %v141, 1.442695
    %v145 = vpow.pop %v144
    %v146 = vld [vmem:[#allocation3] sm:$0xff]
    %v147 = vld [vmem:[#allocation3 + $0x8] sm:$0xff]
    %v148 = vmul.f32 %v127, %v146
    %v149 = vmul.f32 %v129, %v147
    %v150 = vsel %vm115, %v143, 0.0
    %151 = vadd.xlane.f32.xlu0 %v150
    %v152 = vpop.xlane.xlu0 %151
    %v153 = vsel %vm115, %v145, 0.0
    %154 = vadd.xlane.f32.xlu0 %v153
    %v155 = vpop.xlane.xlu0 %154
    %v156 = vadd.f32 %v148, %v152
    %v157 = vadd.f32 %v149, %v155
    %vm158 = vcmask 7168
    %159 = vst.msk [vmem:[#allocation3] sm:$0xff] %vm158, %v156
    %160 = vst.msk [vmem:[#allocation3 + $0x8] sm:$0xff] %vm158, %v157
    %v161 = vld [vmem:[#allocation4] sm:$0xff]
    %v162 = vld [vmem:[#allocation4 + $0x8] sm:$0xff]
    %164 = vset.pattern.permute.xlu0 0
    %165 = vperm.xlu0 %164, %v127
    %v166 = vpop.permute.xlu0 %165
    %169 = vset.pattern.permute.xlu0 0
    %170 = vperm.xlu0 %169, %v129
    %v171 = vpop.permute.xlu0 %170
    %v173 = vmul.f32 %v166, %v161
    %v174 = vmul.f32 %v171, %v162
    %v176 = vsel %vm115, %v143, 0
    %178 = vmatpush.msra.mxu0 0.0
    %179 = vmatpush.msra.mxu0 0.0
    %180 = vmatpush.msra.mxu0 0.0
    %181 = vmatpush.msra.mxu0 0.0
    %182 = vmatpush.msra.mxu0 0.0
    %183 = vmatpush.msra.mxu0 0.0
    %184 = vmatpush.msra.mxu0 0.0
    %185 = vmatpush.msra.mxu0 0.0
    %186 = vmatpush.msra.mxu0 0.0
    %187 = vmatpush.msra.mxu0 0.0
    %188 = vmatpush.msra.mxu0 0.0
    %189 = vmatpush.msra.mxu0 0.0
    %190 = vmatpush.msra.mxu0 0.0
    %191 = vmatpush.msra.mxu0 0.0
    %192 = vmatpush.msra.mxu0 0.0
    %193 = vmatpush.msra.mxu0 %v58
    %194 = vmatmul.f32.gmra.mxu0 %v176
    %v195 = vpop.f32.mrf.mxu0
    %v196 = vadd.f32 0.0, %v195
    %197 = vdwg.mxu0
    %v199 = vsel %vm115, %v145, 0
    %201 = vmatpush.msra.mxu0 0.0
    %202 = vmatpush.msra.mxu0 0.0
    %203 = vmatpush.msra.mxu0 0.0
    %204 = vmatpush.msra.mxu0 0.0
    %205 = vmatpush.msra.mxu0 0.0
    %206 = vmatpush.msra.mxu0 0.0
    %207 = vmatpush.msra.mxu0 0.0
    %208 = vmatpush.msra.mxu0 0.0
    %209 = vmatpush.msra.mxu0 0.0
    %210 = vmatpush.msra.mxu0 0.0
    %211 = vmatpush.msra.mxu0 0.0
    %212 = vmatpush.msra.mxu0 0.0
    %213 = vmatpush.msra.mxu0 0.0
    %214 = vmatpush.msra.mxu0 0.0
    %215 = vmatpush.msra.mxu0 0.0
    %216 = vmatpush.msra.mxu0 %v59
    %217 = vmatmul.f32.gmra.mxu0 %v199
    %v218 = vpop.f32.mrf.mxu0
    %v219 = vadd.f32 0.0, %v218
    %220 = vdwg.mxu0
    %v221 = vadd.f32 %v173, %v196
    %v222 = vadd.f32 %v174, %v219
    %223 = vst.msk [vmem:[#allocation4] sm:$0xff] %vm60, %v221
    %224 = vst.msk [vmem:[#allocation4 + $0x8] sm:$0xff] %vm60, %v222
    %225 = vst.msk [vmem:[#allocation2] sm:$0xff] %vm158, %v122
    %226 = vst.msk [vmem:[#allocation2 + $0x8] sm:$0xff] %vm158, %v123
    // Predicated region
    $region22: #{tpu_custom_call.1} parent=1 // pred_check
      %p227 = pneg %p44
    $region23: #{tpu_custom_call.1} parent=1 // pred_check_branch
      %229 = sbr.rel (%p227) target = $region25
    $region24: #{tpu_custom_call.1} parent=1 // pred_region
      %v230 = vld [vmem:[#allocation3] sm:$0xff]
      %v231 = vld [vmem:[#allocation3 + $0x8] sm:$0xff]
      %v232 = vrcp.pop %v230
      %v233 = vrcp.pop %v231
      %v234 = vld [vmem:[#allocation4] sm:$0xff]
      %v235 = vld [vmem:[#allocation4 + $0x8] sm:$0xff]
      %237 = vset.pattern.permute.xlu0 0
      %238 = vperm.xlu0 %237, %v232
      %v239 = vpop.permute.xlu0 %238
      %242 = vset.pattern.permute.xlu0 0
      %243 = vperm.xlu0 %242, %v233
      %v244 = vpop.permute.xlu0 %243
      %v246 = vmul.f32 %v234, %v239
      %v247 = vmul.f32 %v235, %v244
      %248 = vst.msk [vmem:[#allocation10] sm:$0xff] %vm60, %v246
      %249 = vst.msk [vmem:[#allocation10 + $0x8] sm:$0xff] %vm60, %v247
    $region25: #{tpu_custom_call.1} parent=1 // pred_fallthru
      _
    // Predicated region
    $region26: #{tpu_custom_call.1} parent=1 // pred_check
      _
    $region27: #{tpu_custom_call.1} parent=1 // pred_check_branch
      %251 = sbr.rel (0) target = $region29
    $region28: #{tpu_custom_call.1} parent=1 // pred_region
      %253 = vsyncadd [#allocation7], 0
      %s254 = sshll.u32 [#allocation10], 4
      %s255 = int_to_ptr.vmem [resolvable:$true] %s254
      %s256 = sshll.u32 %s2, 4
      %s257 = int_to_ptr.hbm [resolvable:$true] %s256
      %262 = dma.vmem_to_hbm [thread:$0]  %s255, 256, %s257, [#allocation7], 128, 128, 8
    $region29: #{tpu_custom_call.1} parent=1 // pred_fallthru
      _
    // Predicated region
    $region30: #{tpu_custom_call.1} parent=1 // pred_check
      _
    $region31: #{tpu_custom_call.1} parent=1 // pred_check_branch
      %264 = sbr.rel (0) target = $region33
    $region32: #{tpu_custom_call.1} parent=1 // pred_region
      %266 = dma.done [#allocation7], 256
    $region33: #{tpu_custom_call.1} parent=1 // pred_fallthru
      _
    %267 = vsyncpa [#allocation6], 1
    %268 = vsyncpa [#allocation9], 1
    %269 = vsyncpa [#allocation7], 1

</llo_original>
